<compile_context>
chip_gen: v7x
topology: tpu7x:2x2x1
jax: 0.10.0
libtpu: 0.0.40
codegen_flags: <defaults>
</compile_context>

<pallas_src>
import functools

import jax
import jax.numpy as jnp
from jax.experimental import pallas as pl
from jax.experimental.pallas import tpu as pltpu


def _round_up(x: int, m: int) -> int:
    return ((x + m - 1) // m) * m


def _linear_kernel(x_ref, w_ref, b_ref, o_ref):
    # x_ref: (TB, 64) bf16, w_ref: (64, Cpad) bf16, b_ref: (1, Cpad) f32,
    # o_ref: (TB, Cpad) f32
    acc = jnp.dot(x_ref[...], w_ref[...], preferred_element_type=jnp.float32)
    o_ref[...] = (acc + b_ref[...]).astype(o_ref.dtype)


def prepare_net_cell_params(weight_t, bias):
    """One-time parameter prep (hoisted out of the hot path).

    weight_t: (64, C) f32  (transposed vs PyTorch's (C, 64) layout)
    bias:     (C,)   f32
    Returns (weight_t_padded_bf16 (64, Cpad), bias_padded_f32 (1, Cpad), C).
    """
    D, C = weight_t.shape
    assert D == 64
    c_pad = _round_up(C, 128)
    w_p = jnp.pad(weight_t, ((0, 0), (0, c_pad - C))).astype(jnp.bfloat16)
    b_p = jnp.pad(bias, (0, c_pad - C)).astype(jnp.float32).reshape(1, c_pad)
    return w_p, b_p, C


@functools.partial(jax.jit, static_argnames=("num_classes",))
def net_cell_forward(embedding, weight_t_padded, bias_padded, *, num_classes):
    """embedding: (B, 64) f32; padded params from prepare_net_cell_params.

    Returns (B, num_classes) f32 == embedding @ W^T + b.
    """
    B, D = embedding.shape
    Dw, c_pad = weight_t_padded.shape
    assert D == Dw == 64
    assert c_pad % 128 == 0

    # Batch tile: large enough to pipeline, small enough for v7x VMEM.
    # Per-step footprint (double-buffered in+out) at TB=512, Cpad=128:
    #   2*(512*64*2B) + 2*(512*128*4B) + W/b  ~= 0.7 MiB  << 32 MiB scoped.
    tb = min(512, _round_up(B, 8))
    b_pad = _round_up(B, tb)
    x = embedding.astype(jnp.bfloat16)
    if b_pad != B:
        x = jnp.pad(x, ((0, b_pad - B), (0, 0)))

    grid = (b_pad // tb,)

    out_padded = pl.pallas_call(
        _linear_kernel,
        out_shape=jax.ShapeDtypeStruct((b_pad, c_pad), jnp.float32),
        grid=grid,
        in_specs=[
            pl.BlockSpec((tb, D), lambda i: (i, 0)),       # embedding tile
            pl.BlockSpec((D, c_pad), lambda i: (0, 0)),    # weight (resident)
            pl.BlockSpec((1, c_pad), lambda i: (0, 0)),    # bias (resident)
        ],
        out_specs=pl.BlockSpec((tb, c_pad), lambda i: (i, 0)),
        compiler_params=pltpu.CompilerParams(
            dimension_semantics=("parallel",),  # v7x: shard batch across 2 TCs
        ),
    )(x, weight_t_padded, bias_padded)

    return out_padded[:B, :num_classes]


if __name__ == "__main__":
    # Config: number_of_class
    num_of_class = 10
    in_features = 64
    batch = 8

    key = jax.random.PRNGKey(0)
    k_x, k_w, k_b = jax.random.split(key, 3)

    # Deterministic synthetic params (PyTorch default init ~ U(-1/sqrt(64), 1/sqrt(64))).
    bound = 1.0 / (in_features ** 0.5)
    # PyTorch stores weight as (num_of_class, 64); we keep the transposed (64, num_of_class).
    weight_t = jax.random.uniform(
        k_w, (in_features, num_of_class), jnp.float32, -bound, bound
    )
    bias = jax.random.uniform(k_b, (num_of_class,), jnp.float32, -bound, bound)

    embedding = jax.random.normal(k_x, (batch, in_features), jnp.float32)

    # One-time parameter prep (padding + bf16 cast), then the forward pass.
    w_p, b_p, n_cls = prepare_net_cell_params(weight_t, bias)
    out = net_cell_forward(embedding, w_p, b_p, num_classes=n_cls)
    out = jax.block_until_ready(out)

    # Reference check against plain JAX (bf16 inputs -> slightly looser tol).
    ref = embedding @ weight_t + bias[None, :]
    assert out.shape == (batch, num_of_class)
    assert jnp.allclose(out, ref, atol=2e-2, rtol=2e-2), (
        float(jnp.max(jnp.abs(out - ref)))
    )

    print("KERNEL_OK")
</pallas_src>

<mosaic_0001>
module attributes {stable_mosaic.version = 11 : i64} {
  func.func @_linear_kernel(%arg0: i32, %arg1: memref<8x64xbf16, #tpu.memory_space<vmem>>, %arg2: memref<64x128xbf16, #tpu.memory_space<vmem>>, %arg3: memref<1x128xf32, #tpu.memory_space<vmem>>, %arg4: memref<8x128xf32, #tpu.memory_space<vmem>>) attributes {dimension_semantics = [#tpu.dimension_semantics<parallel>], iteration_bounds = array<i64: 1>, scalar_prefetch = 0 : i64, scratch_operands = 0 : i64, tpu.core_type = #tpu.core_type<tc>, window_params = [{transform_indices = @transform_0, window_bounds = array<i64: 8, 64>}, {pipeline_mode = #tpu.pipeline_mode<synchronous>, transform_indices = @transform_1, window_bounds = array<i64: 64, 128>}, {pipeline_mode = #tpu.pipeline_mode<synchronous>, transform_indices = @transform_2, window_bounds = array<i64: 1, 128>}, {transform_indices = @transform_3, window_bounds = array<i64: 8, 128>}]} {
    %c0 = arith.constant 0 : index
    %c0_0 = arith.constant 0 : index
    %0 = vector.load %arg1[%c0, %c0_0] : memref<8x64xbf16, #tpu.memory_space<vmem>>, vector<8x64xbf16>
    %c0_1 = arith.constant 0 : index
    %c0_2 = arith.constant 0 : index
    %1 = vector.load %arg2[%c0_1, %c0_2] : memref<64x128xbf16, #tpu.memory_space<vmem>>, vector<64x128xbf16>
    %cst = arith.constant dense<0.000000e+00> : vector<8x128xf32>
    %2 = tpu.matmul %0, %1, %cst {dimension_numbers = #tpu.dot_dimension_numbers<[1], [0], [0], [1], [0, 0, 1, 1], [], []>} : vector<8x64xbf16>, vector<64x128xbf16>, vector<8x128xf32> -> vector<8x128xf32>
    %c0_3 = arith.constant 0 : index
    %c0_4 = arith.constant 0 : index
    %3 = vector.load %arg3[%c0_3, %c0_4] : memref<1x128xf32, #tpu.memory_space<vmem>>, vector<1x128xf32>
    %4 = vector.broadcast %3 : vector<1x128xf32> to vector<8x128xf32>
    %5 = arith.addf %2, %4 : vector<8x128xf32>
    %c0_5 = arith.constant 0 : index
    %c0_6 = arith.constant 0 : index
    %6 = vector.load %arg4[%c0_5, %c0_6] : memref<8x128xf32, #tpu.memory_space<vmem>>, vector<8x128xf32>
    tpu.vector_store %arg4[%c0_5, %c0_6], %5 {strides = array<i32>} : memref<8x128xf32, #tpu.memory_space<vmem>>, vector<8x128xf32>,
    return
  }
  func.func @transform_0(%arg0: i32) -> (i32, i32) {
    %c0_i32 = arith.constant 0 : i32
    %c0_i32_0 = arith.constant 0 : i32
    return %arg0, %c0_i32 : i32, i32
  }
  func.func @transform_1(%arg0: i32) -> (i32, i32) {
    %c0_i32 = arith.constant 0 : i32
    %c0_i32_0 = arith.constant 0 : i32
    %c0_i32_1 = arith.constant 0 : i32
    return %c0_i32, %c0_i32_0 : i32, i32
  }
  func.func @transform_2(%arg0: i32) -> (i32, i32) {
    %c0_i32 = arith.constant 0 : i32
    %c0_i32_0 = arith.constant 0 : i32
    %c0_i32_1 = arith.constant 0 : i32
    return %c0_i32, %c0_i32_0 : i32, i32
  }
  func.func @transform_3(%arg0: i32) -> (i32, i32) {
    %c0_i32 = arith.constant 0 : i32
    %c0_i32_0 = arith.constant 0 : i32
    return %arg0, %c0_i32 : i32, i32
  }
}

</mosaic_0001>

<llo_original>
// kernel: net_cell_forward.1
$region0: #{net_cell_forward.1}
  #allocation0 [shape = 'u32[]', space=smem, size = 0x4, offset = 0x4, fixed_abs, tag = 'smem constant byte address 0x4 - core index']
  #allocation1 [shape = 'u32[144,128]{1,0:T(1,128)}', space=vmem, size = 0x12000, scoped, tag = 'internal scratch']
  %s0 = inlined_call_operand.vmem [shape: bf16[8,64], index: 0, kind: input, shape index: {}]
  %s1 = inlined_call_operand.hbm [shape: bf16[64,128], index: 1, kind: input, shape index: {}]
  %s2 = inlined_call_operand.vmem [shape: f32[1,128], index: 2, kind: input, shape index: {}]
  %s3 = inlined_call_operand.hbm [shape: f32[8,128], index: 3, kind: output, shape index: {}]
  %s4 = sld [smem:[#allocation0]]
  $region26: #{net_cell_forward.1} parent=0
    _
  %s6 = ssub.s32 1, %s4
  %s7 = scalar_select 0, %s6, %s4
  $region1: #{net_cell_forward.1} parent=0
    #allocation2 [shape = 'u8[16384]{0}', space=vmem, size = 0x4000, scoped, tag = 'input window, operand 1, single buffered']
    #allocation3 [shape = 's32[1]{0}', space=sflag, size = 0x4, scoped, tag = 'scoped memory for net_cell_forward.1']
    #allocation4 [shape = 's32[1]{0}', space=sflag, size = 0x4, scoped, tag = 'scoped memory for net_cell_forward.1']
    #allocation5 [shape = 'u8[4096]{0}', space=vmem, size = 0x1000, scoped, tag = 'output window, operand 0, single buffered']
    %8 = vsyncpa [#allocation3], 0
    %9 = vsyncpa [#allocation4], 0
    // Predicated region
    $region2: #{net_cell_forward.1} parent=1 // pred_check
      _
    $region3: #{net_cell_forward.1} parent=1 // pred_check_branch
      %11 = sbr.rel (0) target = $region5
    $region4: #{net_cell_forward.1} parent=1 // pred_region
      _
    $region5: #{net_cell_forward.1} parent=1 // pred_fallthru
      _
    // Predicated region
    $region6: #{net_cell_forward.1} parent=1 // pred_check
      _
    $region7: #{net_cell_forward.1} parent=1 // pred_check_branch
      %13 = sbr.rel (0) target = $region9
    $region8: #{net_cell_forward.1} parent=1 // pred_region
      %s15 = ssub.s32 512, 512
      %16 = vsyncadd [#allocation3], %s15
      %s17 = sshll.u32 [#allocation2], 4
      %s18 = int_to_ptr.vmem [resolvable:$true] %s17
      %23 = dma.hbm_to_vmem [thread:$0]  %s1, 512, %s18, [#allocation3], 64, 64, 4
    $region9: #{net_cell_forward.1} parent=1 // pred_fallthru
      _
    // Predicated region
    $region10: #{net_cell_forward.1} parent=1 // pred_check
      _
    $region11: #{net_cell_forward.1} parent=1 // pred_check_branch
      %25 = sbr.rel (0) target = $region13
    $region12: #{net_cell_forward.1} parent=1 // pred_region
      _
    $region13: #{net_cell_forward.1} parent=1 // pred_fallthru
      _
    // Predicated region
    $region14: #{net_cell_forward.1} parent=1 // pred_check
      _
    $region15: #{net_cell_forward.1} parent=1 // pred_check_branch
      %27 = sbr.rel (0) target = $region17
    $region16: #{net_cell_forward.1} parent=1 // pred_region
      %28 = dma.done [#allocation3], 512
    $region17: #{net_cell_forward.1} parent=1 // pred_fallthru
      _
    %v30 = vld [vmem:[%s0] sm:$0xf]
    %v31 = vld [vmem:[#allocation2] sm:$0xf]
    %v32 = vld [vmem:[#allocation2 + $0x4] sm:$0xf]
    %v33 = vld [vmem:[#allocation2 + $0x8] sm:$0xf]
    %v34 = vld [vmem:[#allocation2 + $0xc] sm:$0xf]
    %v35 = vld [vmem:[#allocation2 + $0x10] sm:$0xf]
    %v36 = vld [vmem:[#allocation2 + $0x14] sm:$0xf]
    %v37 = vld [vmem:[#allocation2 + $0x18] sm:$0xf]
    %v38 = vld [vmem:[#allocation2 + $0x1c] sm:$0xf]
    %v39 = vld [vmem:[%s2] sm:$0x1]
    %v41 = vlaneseq
    %v42 = vshrl.u32 %v41, 7
    %v43 = vsub.s32 0, %v42
    %v44 = vrot.slane %v39, %v43
    %v54 = vunpack.c.l.b16 %v31
    %v55 = vunpack.c.l.b16 %v32
    %v56 = vunpack.c.l.b16 %v33
    %v57 = vunpack.c.l.b16 %v34
    %v58 = vunpack.c.l.b16 %v35
    %v59 = vunpack.c.l.b16 %v36
    %v60 = vunpack.c.l.b16 %v37
    %v61 = vunpack.c.l.b16 %v38
    %v62 = vpack.c.b16 %v55, %v54
    %v63 = vpack.c.b16 %v57, %v56
    %v64 = vpack.c.b16 %v59, %v58
    %v65 = vpack.c.b16 %v61, %v60
    %vm70 = vcmask 523264
    %v72 = vsel %vm70, %v30, 0
    %74 = vmatprep.subr.bf16.mxu0 0
    %75 = vmatpush1.bf16.msra.mxu0 %v62
    %76 = vmatprep.subr.bf16.mxu0 0
    %77 = vmatpush1.bf16.msra.mxu0 %v63
    %78 = vmatprep.subr.bf16.mxu0 0
    %79 = vmatpush1.bf16.msra.mxu0 %v64
    %80 = vmatprep.subr.bf16.mxu0 0
    %81 = vmatpush1.bf16.msra.mxu0 %v65
    %82 = vmatprep.subr.bf16.mxu0 0
    %83 = vmatpush1.bf16.msra.mxu0 0
    %84 = vmatprep.subr.bf16.mxu0 0
    %85 = vmatpush1.bf16.msra.mxu0 0
    %86 = vmatprep.subr.bf16.mxu0 0
    %87 = vmatpush1.bf16.msra.mxu0 0
    %88 = vmatprep.subr.bf16.mxu0 0
    %89 = vmatpush1.bf16.msra.mxu0 0
    %90 = vmatprep.subr.bf16.mxu0 0
    %91 = vmatpush1.bf16.msra.mxu0 0
    %92 = vmatprep.subr.bf16.mxu0 0
    %93 = vmatpush1.bf16.msra.mxu0 0
    %94 = vmatprep.subr.bf16.mxu0 0
    %95 = vmatpush1.bf16.msra.mxu0 0
    %96 = vmatprep.subr.bf16.mxu0 0
    %97 = vmatpush1.bf16.msra.mxu0 0
    %98 = vmatprep.subr.bf16.mxu0 0
    %99 = vmatpush1.bf16.msra.mxu0 0
    %100 = vmatprep.subr.bf16.mxu0 0
    %101 = vmatpush1.bf16.msra.mxu0 0
    %102 = vmatprep.subr.bf16.mxu0 0
    %103 = vmatpush1.bf16.msra.mxu0 0
    %104 = vmatprep.subr.bf16.mxu0 0
    %105 = vmatpush1.bf16.msra.mxu0 0
    %106 = vmatprep.mubr.bf16.mxu0 0
    %107 = vmatmul.mubr.bf16.gmra.mrb[0].mxu0 %v72
    %v108 = vpop.f32.mrb[0].mxu0
    %v109 = vadd.f32 %v44, %v108
    %v110 = vpop.f32.mrb[0].mxu0
    %v111 = vpop.f32.mrb[0].mxu0
    %v112 = vpop.f32.mrb[0].mxu0
    %113 = vdwg.mxu0
    %114 = vst [vmem:[#allocation5] sm:$0xff] %v109
    // Predicated region
    $region18: #{net_cell_forward.1} parent=1 // pred_check
      _
    $region19: #{net_cell_forward.1} parent=1 // pred_check_branch
      %116 = sbr.rel (0) target = $region21
    $region20: #{net_cell_forward.1} parent=1 // pred_region
      %s118 = ssub.s32 128, 128
      %119 = vsyncadd [#allocation4], %s118
      %s121 = sshll.u32 [#allocation5], 4
      %s122 = int_to_ptr.vmem [resolvable:$true] %s121
      %124 = dma.vmem_to_hbm [thread:$0]  %s122, 128, %s3, [#allocation4]
    $region21: #{net_cell_forward.1} parent=1 // pred_fallthru
      _
    // Predicated region
    $region22: #{net_cell_forward.1} parent=1 // pred_check
      _
    $region23: #{net_cell_forward.1} parent=1 // pred_check_branch
      %126 = sbr.rel (0) target = $region25
    $region24: #{net_cell_forward.1} parent=1 // pred_region
      %127 = dma.done [#allocation4], 128
    $region25: #{net_cell_forward.1} parent=1 // pred_fallthru
      _
    %128 = vsyncpa [#allocation3], 1
    %129 = vsyncpa [#allocation4], 1

</llo_original>
